<compile_context>
chip_gen: v6e
topology: v6e:2x2x1
jax: 0.10.0
libtpu: 0.0.40
codegen_flags: <defaults>
</compile_context>

<pallas_src>
import jax
import jax.numpy as jnp
from jax.experimental import pallas as pl
from jax.experimental.pallas import tpu as pltpu

_LANE = 128


def _binarize(t):
    # masked_fill(t, t==0, 1e-10) then sign  ==  zeros map to +1
    return jnp.where(t >= 0, 1.0, -1.0)


def _round_up(x, m):
    return (x + m - 1) // m * m


def _vmem_budget_bytes():
    """Generation-aware VMEM budget (leave headroom for compiler scratch)."""
    phys = 64 * 1024 * 1024  # conservative default (v7x per-TC VMEM)
    try:
        info = pltpu.get_tpu_info()
        phys = int(getattr(info, "vmem_capacity_bytes", phys))
    except Exception:
        pass
    # ~48 MiB on a 64 MiB v7x, ~96 MiB on 128 MiB v5e/v6e.
    return min((phys * 3) // 4, 100 * 1024 * 1024)


# ----------------------------------------------------------------------------
# Kernels
# ----------------------------------------------------------------------------

def _full_k_kernel(x_ref, wt_ref, nb_ref, o_ref):
    """Full-K path: one dot per (tm, tn) output tile; bias folded into compare."""
    y = jnp.dot(x_ref[...].astype(jnp.bfloat16), wt_ref[...],
                preferred_element_type=jnp.float32)
    # y + b >= 0  <=>  y >= -b ; zeros map to +1 (matches masked_fill + sign).
    o_ref[...] = jnp.where(y >= nb_ref[...], 1.0, -1.0).astype(o_ref.dtype)


def _k_tiled_kernel(x_ref, wt_ref, nb_ref, o_ref, acc_ref):
    """Fallback for very large K: reduction along grid axis 2 with f32 acc."""
    k = pl.program_id(2)

    @pl.when(k == 0)
    def _():
        acc_ref[...] = jnp.zeros_like(acc_ref)

    acc_ref[...] += jnp.dot(x_ref[...].astype(jnp.bfloat16), wt_ref[...],
                            preferred_element_type=jnp.float32)

    @pl.when(k == pl.num_programs(2) - 1)
    def _():
        o_ref[...] = jnp.where(acc_ref[...] >= nb_ref[...],
                               1.0, -1.0).astype(o_ref.dtype)


# ----------------------------------------------------------------------------
# Parameter prep (once at init, NOT per forward call)
# ----------------------------------------------------------------------------

def prepare_binary_linear_params(weight, bias):
    """Binarize once, transpose (N,K)->(K,N), bf16, pad N to a lane multiple.

    K is left unpadded (the kernel uses full-K blocks, which are always legal).
    Bias is stored pre-negated so the kernel epilogue is a single compare.
    """
    n_out, k_in = weight.shape
    np_ = _round_up(n_out, _LANE)

    wt = _binarize(weight.astype(jnp.float32)).T.astype(jnp.bfloat16)   # (K, N)
    wt = jnp.pad(wt, ((0, 0), (0, np_ - n_out)))

    nb = (-_binarize(bias.astype(jnp.float32))).reshape(1, n_out)
    nb = jnp.pad(nb, ((0, 0), (0, np_ - n_out))).astype(jnp.bfloat16)   # -b
    return wt, nb


# ----------------------------------------------------------------------------
# Forward wrappers
# ----------------------------------------------------------------------------

def _binary_block_full_k(x, wt_pad, nb_pad, n_out, tm, tn, vmem_limit):
    m, k_in = x.shape
    _, np_ = wt_pad.shape
    grid = (pl.cdiv(m, tm), pl.cdiv(np_, tn))

    out = pl.pallas_call(
        _full_k_kernel,
        out_shape=jax.ShapeDtypeStruct((m, np_), jnp.bfloat16),
        grid=grid,
        in_specs=[
            pl.BlockSpec((tm, k_in), lambda i, j: (i, 0)),   # x tile (full K)
            pl.BlockSpec((k_in, tn), lambda i, j: (0, j)),   # Wt tile (full K)
            pl.BlockSpec((1, tn), lambda i, j: (0, j)),      # -bias tile
        ],
        out_specs=pl.BlockSpec((tm, tn), lambda i, j: (i, j)),
        compiler_params=pltpu.CompilerParams(
            dimension_semantics=("parallel", "parallel"),
            vmem_limit_bytes=int(vmem_limit),
        ),
    )(x, wt_pad, nb_pad)
    return out[:, :n_out]


def _binary_block_k_tiled(x, wt_pad, nb_pad, n_out, tm, tn, vmem_limit):
    m, k_in = x.shape
    _, np_ = wt_pad.shape
    x_bytes = jnp.dtype(x.dtype).itemsize

    def footprint(tk_):
        return (2 * tm * tk_ * x_bytes          # x (double-buffered)
                + 2 * tk_ * tn * 2              # Wt bf16
                + 2 * tm * tn * 2               # out bf16
                + tm * tn * 4                   # f32 accumulator
                + 2 * 2 * tn)                   # bias

    tk = 512
    while footprint(tk * 2) <= vmem_limit and tk * 2 < k_in:
        tk *= 2
    while footprint(tk) > vmem_limit and tk > 128:
        tk //= 2

    kp = _round_up(k_in, tk)
    xp = x if kp == k_in else jnp.pad(x, ((0, 0), (0, kp - k_in)))
    wtp = wt_pad if kp == k_in else jnp.pad(wt_pad, ((0, kp - k_in), (0, 0)))

    grid = (pl.cdiv(m, tm), pl.cdiv(np_, tn), kp // tk)
    out = pl.pallas_call(
        _k_tiled_kernel,
        out_shape=jax.ShapeDtypeStruct((m, np_), jnp.bfloat16),
        grid=grid,
        in_specs=[
            pl.BlockSpec((tm, tk), lambda i, j, k: (i, k)),
            pl.BlockSpec((tk, tn), lambda i, j, k: (k, j)),
            pl.BlockSpec((1, tn), lambda i, j, k: (0, j)),
        ],
        out_specs=pl.BlockSpec((tm, tn), lambda i, j, k: (i, j)),
        scratch_shapes=[pltpu.VMEM((tm, tn), jnp.float32)],
        compiler_params=pltpu.CompilerParams(
            dimension_semantics=("parallel", "parallel", "arbitrary"),
            vmem_limit_bytes=int(vmem_limit),
        ),
    )(xp, wtp, nb_pad)
    return out[:, :n_out]


def binary_block(x, wt_pad, nb_pad, n_out):
    """x: (M, K) float; wt_pad: (K, Np) bf16 pre-binarized; nb_pad: (1, Np) bf16 = -binarize(bias)."""
    m, k_in = x.shape
    kw, np_ = wt_pad.shape
    assert kw == k_in, "weight K dim must match x K dim (no K padding at prep)"

    budget = _vmem_budget_bytes()
    x_bytes = jnp.dtype(x.dtype).itemsize

    # --- tile selection -------------------------------------------------
    # tm == m (full dim, always legal) for small M; cap at 512 otherwise.
    tm = m if m < 512 else 512
    tn = min(np_, 512)
    # Keep >= 2 parallel tiles when M collapses to one tile (v7x dual-TC).
    if pl.cdiv(m, tm) == 1 and np_ > _LANE:
        tn = min(tn, _round_up(pl.cdiv(np_, 2), _LANE))

    def full_k_bytes(tm_, tn_):
        return (2 * tm_ * k_in * x_bytes        # x (double-buffered)
                + 2 * k_in * tn_ * 2            # Wt bf16
                + 2 * tm_ * tn_ * 2             # out bf16
                + 2 * tm_ * tn_ * 4             # f32 dot result headroom
                + 2 * 2 * tn_)                  # bias

    # Shrink tm/tn (keeping 8/128 alignment) until the full-K footprint fits.
    while full_k_bytes(tm, tn) > budget and (tm > 128 or tn > _LANE):
        if tm >= tn and tm > 128:
            tm = max(128, _round_up(tm // 2, 8))
        else:
            tn = max(_LANE, tn // 2)

    if full_k_bytes(tm, tn) <= budget:
        return _binary_block_full_k(x, wt_pad, nb_pad, n_out, tm, tn, budget)
    # K too large to keep resident: fall back to K-grid reduction.
    return _binary_block_k_tiled(x, wt_pad, nb_pad, n_out, tm, tn, budget)


# ----------------------------------------------------------------------------
# Test
# ----------------------------------------------------------------------------

if __name__ == "__main__":

    def run_case(key, batch, in_features, out_features):
        kx, kw, kb = jax.random.split(key, 3)
        # Deterministic init mirroring BinaryLinear.__init__:
        #   weight = sign(randn(out, in)), bias = sign(randn(out))
        x = jax.random.normal(kx, (batch, in_features), dtype=jnp.float32)
        weight = jnp.sign(jax.random.normal(kw, (out_features, in_features),
                                            dtype=jnp.float32))
        bias = jnp.sign(jax.random.normal(kb, (out_features,),
                                          dtype=jnp.float32))

        wt_pad, nb_pad = prepare_binary_linear_params(weight, bias)
        out = jax.block_until_ready(binary_block(x, wt_pad, nb_pad, out_features))
        out_f32 = out.astype(jnp.float32)

        # Reference at the kernel's operand precision (bf16 x; +/-1 weights
        # are exact in bf16; f32 accumulate). Sign flips are tolerated only
        # where the pre-activation is essentially zero.
        wb = _binarize(weight)
        bb = _binarize(bias)
        x_b = x.astype(jnp.bfloat16).astype(jnp.float32)
        y_ref = x_b @ wb.T + bb
        ref = jnp.where(y_ref >= 0, 1.0, -1.0)

        assert out.shape == (batch, out_features)
        assert bool(jnp.all(jnp.abs(out_f32) == 1.0)), "output must be +/-1"
        ok = (out_f32 == ref) | (jnp.abs(y_ref) < 1e-2)
        assert bool(jnp.all(ok)), "mismatch vs reference"

    key = jax.random.PRNGKey(0)
    k1, k2 = jax.random.split(key)

    # Small shape consistent with the module's forward: (batch, in_features).
    run_case(k1, batch=8, in_features=32, out_features=32)
    # Larger case: non-8-multiple M (full-dim tile), unpadded K, lane-padded N
    # split into two parallel tiles -- same full-K path.
    run_case(k2, batch=300, in_features=96, out_features=200)

    print("KERNEL_OK")
</pallas_src>

<mosaic_0001>
module attributes {stable_mosaic.version = 11 : i64} {
  func.func @_full_k_kernel(%arg0: i32, %arg1: i32, %arg2: memref<8x32xf32, #tpu.memory_space<vmem>>, %arg3: memref<32x128xbf16, #tpu.memory_space<vmem>>, %arg4: memref<1x128xbf16, #tpu.memory_space<vmem>>, %arg5: memref<8x128xbf16, #tpu.memory_space<vmem>>) attributes {dimension_semantics = [#tpu.dimension_semantics<parallel>, #tpu.dimension_semantics<parallel>], iteration_bounds = array<i64: 1, 1>, scalar_prefetch = 0 : i64, scratch_operands = 0 : i64, tpu.core_type = #tpu.core_type<tc>, window_params = [{transform_indices = @transform_0, window_bounds = array<i64: 8, 32>}, {transform_indices = @transform_1, window_bounds = array<i64: 32, 128>}, {transform_indices = @transform_2, window_bounds = array<i64: 1, 128>}, {transform_indices = @transform_3, window_bounds = array<i64: 8, 128>}]} {
    %c0 = arith.constant 0 : index
    %c0_0 = arith.constant 0 : index
    %0 = vector.load %arg2[%c0, %c0_0] : memref<8x32xf32, #tpu.memory_space<vmem>>, vector<8x32xf32>
    %1 = arith.truncf %0 : vector<8x32xf32> to vector<8x32xbf16>
    %c0_1 = arith.constant 0 : index
    %c0_2 = arith.constant 0 : index
    %2 = vector.load %arg3[%c0_1, %c0_2] : memref<32x128xbf16, #tpu.memory_space<vmem>>, vector<32x128xbf16>
    %cst = arith.constant dense<0.000000e+00> : vector<8x128xf32>
    %3 = tpu.matmul %1, %2, %cst {dimension_numbers = #tpu.dot_dimension_numbers<[1], [0], [0], [1], [0, 0, 1, 1], [], []>} : vector<8x32xbf16>, vector<32x128xbf16>, vector<8x128xf32> -> vector<8x128xf32>
    %c0_3 = arith.constant 0 : index
    %c0_4 = arith.constant 0 : index
    %4 = vector.load %arg4[%c0_3, %c0_4] : memref<1x128xbf16, #tpu.memory_space<vmem>>, vector<1x128xbf16>
    %5 = arith.extf %4 : vector<1x128xbf16> to vector<1x128xf32>
    %6 = vector.broadcast %5 : vector<1x128xf32> to vector<8x128xf32>
    %7 = arith.cmpf oge, %3, %6 : vector<8x128xf32>
    %cst_5 = arith.constant 1.000000e+00 : f32
    %cst_6 = arith.constant -1.000000e+00 : f32
    %8 = vector.broadcast %cst_5 : f32 to vector<8x128xf32>
    %9 = vector.broadcast %cst_6 : f32 to vector<8x128xf32>
    %10 = arith.select %7, %8, %9 : vector<8x128xi1>, vector<8x128xf32>
    %11 = arith.truncf %10 : vector<8x128xf32> to vector<8x128xbf16>
    %c0_7 = arith.constant 0 : index
    %c0_8 = arith.constant 0 : index
    %12 = vector.load %arg5[%c0_7, %c0_8] : memref<8x128xbf16, #tpu.memory_space<vmem>>, vector<8x128xbf16>
    tpu.vector_store %arg5[%c0_7, %c0_8], %11 {strides = array<i32>} : memref<8x128xbf16, #tpu.memory_space<vmem>>, vector<8x128xbf16>,
    return
  }
  func.func @transform_0(%arg0: i32, %arg1: i32) -> (i32, i32) {
    %c0_i32 = arith.constant 0 : i32
    %c0_i32_0 = arith.constant 0 : i32
    return %arg0, %c0_i32 : i32, i32
  }
  func.func @transform_1(%arg0: i32, %arg1: i32) -> (i32, i32) {
    %c0_i32 = arith.constant 0 : i32
    %c0_i32_0 = arith.constant 0 : i32
    return %c0_i32, %arg1 : i32, i32
  }
  func.func @transform_2(%arg0: i32, %arg1: i32) -> (i32, i32) {
    %c0_i32 = arith.constant 0 : i32
    %c0_i32_0 = arith.constant 0 : i32
    return %c0_i32, %arg1 : i32, i32
  }
  func.func @transform_3(%arg0: i32, %arg1: i32) -> (i32, i32) {
    %c0_i32 = arith.constant 0 : i32
    return %arg0, %arg1 : i32, i32
  }
}

</mosaic_0001>

<llo_original>
// kernel: tpu_custom_call.1
$region0: #{tpu_custom_call.1}
  #allocation0 [shape = 'u32[]', space=smem, size = 0x4, offset = 0x4, fixed_abs, tag = 'smem constant byte address 0x4 - core index']
  #allocation1 [shape = 'u32[144,128]{1,0:T(1,128)}', space=vmem, size = 0x12000, scoped, tag = 'internal scratch']
  %s0 = inlined_call_operand.hbm [shape: f32[8,32], index: 0, kind: input, shape index: {}]
  %s1 = inlined_call_operand.hbm [shape: bf16[32,128], index: 1, kind: input, shape index: {}]
  %s2 = inlined_call_operand.vmem [shape: bf16[1,128], index: 2, kind: input, shape index: {}]
  %s3 = inlined_call_operand.hbm [shape: bf16[8,128], index: 3, kind: output, shape index: {}]
  %s4 = sld [smem:[#allocation0]]
  $region30: #{tpu_custom_call.1} parent=0
    _
  %s6 = ssub.s32 1, %s4
  %s7 = scalar_select 0, %s6, %s4
  $region1: #{tpu_custom_call.1} parent=0
    #allocation2 [shape = 'u8[4096]{0}', space=vmem, size = 0x1000, scoped, tag = 'input window, operand 0, single buffered']
    #allocation3 [shape = 's32[1]{0}', space=sflag, size = 0x4, scoped, tag = 'scoped memory for tpu_custom_call.1']
    #allocation4 [shape = 's32[1]{0}', space=sflag, size = 0x4, scoped, tag = 'scoped memory for tpu_custom_call.1']
    #allocation5 [shape = 'u8[8192]{0}', space=vmem, size = 0x2000, scoped, tag = 'input window, operand 1, single buffered']
    #allocation6 [shape = 's32[1]{0}', space=sflag, size = 0x4, scoped, tag = 'scoped memory for tpu_custom_call.1']
    #allocation7 [shape = 'u8[2048]{0}', space=vmem, size = 0x800, scoped, tag = 'output window, operand 0, single buffered']
    %8 = vsyncpa [#allocation3], 0
    %9 = vsyncpa [#allocation6], 0
    %10 = vsyncpa [#allocation4], 0
    // Predicated region
    $region2: #{tpu_custom_call.1} parent=1 // pred_check
      _
    $region3: #{tpu_custom_call.1} parent=1 // pred_check_branch
      %12 = sbr.rel (0) target = $region5
    $region4: #{tpu_custom_call.1} parent=1 // pred_region
      %s14 = ssub.s32 128, 128
      %15 = vsyncadd [#allocation3], %s14
      %s17 = sshll.u32 [#allocation2], 4
      %s18 = int_to_ptr.vmem [resolvable:$true] %s17
      %20 = dma.hbm_to_vmem [thread:$0]  %s0, 128, %s18, [#allocation3]
    $region5: #{tpu_custom_call.1} parent=1 // pred_fallthru
      _
    // Predicated region
    $region6: #{tpu_custom_call.1} parent=1 // pred_check
      _
    $region7: #{tpu_custom_call.1} parent=1 // pred_check_branch
      %22 = sbr.rel (0) target = $region9
    $region8: #{tpu_custom_call.1} parent=1 // pred_region
      %s24 = ssub.s32 256, 256
      %25 = vsyncadd [#allocation6], %s24
      %s26 = sshll.u32 [#allocation5], 4
      %s27 = int_to_ptr.vmem [resolvable:$true] %s26
      %32 = dma.hbm_to_vmem [thread:$0]  %s1, 256, %s27, [#allocation6], 64, 64, 4
    $region9: #{tpu_custom_call.1} parent=1 // pred_fallthru
      _
    // Predicated region
    $region10: #{tpu_custom_call.1} parent=1 // pred_check
      _
    $region11: #{tpu_custom_call.1} parent=1 // pred_check_branch
      %34 = sbr.rel (0) target = $region13
    $region12: #{tpu_custom_call.1} parent=1 // pred_region
      _
    $region13: #{tpu_custom_call.1} parent=1 // pred_fallthru
      _
    // Predicated region
    $region14: #{tpu_custom_call.1} parent=1 // pred_check
      _
    $region15: #{tpu_custom_call.1} parent=1 // pred_check_branch
      %36 = sbr.rel (0) target = $region17
    $region16: #{tpu_custom_call.1} parent=1 // pred_region
      %37 = dma.done [#allocation3], 128
    $region17: #{tpu_custom_call.1} parent=1 // pred_fallthru
      _
    // Predicated region
    $region18: #{tpu_custom_call.1} parent=1 // pred_check
      _
    $region19: #{tpu_custom_call.1} parent=1 // pred_check_branch
      %39 = sbr.rel (0) target = $region21
    $region20: #{tpu_custom_call.1} parent=1 // pred_region
      %40 = dma.done [#allocation6], 256
    $region21: #{tpu_custom_call.1} parent=1 // pred_fallthru
      _
    %v42 = vld [vmem:[#allocation2] sm:$0xff]
    %v43 = vpack.c.bf16 %v42, %v42
    %v44 = vld [vmem:[#allocation5] sm:$0xf]
    %v45 = vld [vmem:[#allocation5 + $0x4] sm:$0xf]
    %v46 = vld [vmem:[#allocation5 + $0x8] sm:$0xf]
    %v47 = vld [vmem:[#allocation5 + $0xc] sm:$0xf]
    %v52 = vunpack.c.l.b16 %v44
    %v53 = vunpack.c.l.b16 %v45
    %v54 = vunpack.c.l.b16 %v46
    %v55 = vunpack.c.l.b16 %v47
    %v56 = vpack.c.b16 %v53, %v52
    %v57 = vpack.c.b16 %v55, %v54
    %vm60 = vcmask 261120
    %v62 = vsel %vm60, %v43, 0
    %64 = vmatprep.subr.bf16.mxu0 0
    %65 = vmatpush1.bf16.msra.mxu0 0
    %66 = vmatprep.subr.bf16.mxu0 0
    %67 = vmatpush1.bf16.msra.mxu0 0
    %68 = vmatprep.subr.bf16.mxu0 0
    %69 = vmatpush1.bf16.msra.mxu0 0
    %70 = vmatprep.subr.bf16.mxu0 0
    %71 = vmatpush1.bf16.msra.mxu0 0
    %72 = vmatprep.subr.bf16.mxu0 0
    %73 = vmatpush1.bf16.msra.mxu0 0
    %74 = vmatprep.subr.bf16.mxu0 0
    %75 = vmatpush1.bf16.msra.mxu0 0
    %76 = vmatprep.subr.bf16.mxu0 0
    %77 = vmatpush1.bf16.msra.mxu0 %v57
    %78 = vmatprep.subr.bf16.mxu0 0
    %79 = vmatpush1.bf16.msra.mxu0 %v56
    %80 = vmatprep.subr.bf16.mxu0 0
    %81 = vmatpush2.bf16.msra.mxu0 0
    %82 = vmatprep.subr.bf16.mxu0 0
    %83 = vmatpush2.bf16.msra.mxu0 0
    %84 = vmatprep.subr.bf16.mxu0 0
    %85 = vmatpush2.bf16.msra.mxu0 0
    %86 = vmatprep.subr.bf16.mxu0 0
    %87 = vmatpush2.bf16.msra.mxu0 0
    %88 = vmatprep.subr.bf16.mxu0 0
    %89 = vmatpush2.bf16.msra.mxu0 0
    %90 = vmatprep.subr.bf16.mxu0 0
    %91 = vmatpush2.bf16.msra.mxu0 0
    %92 = vmatprep.subr.bf16.mxu0 0
    %93 = vmatpush2.bf16.msra.mxu0 0
    %94 = vmatprep.subr.bf16.mxu0 0
    %95 = vmatpush2.bf16.msra.mxu0 0
    %96 = vmatprep.mubr.bf16.mxu0 0
    %97 = vmatmul.mubr.bf16.gmra.mxu0 %v62
    %v98 = vpop.f32.mrf.mxu0
    %v99 = vadd.f32 0.0, %v98
    %v100 = vpop.f32.mrf.mxu0
    %v101 = vpop.f32.mrf.mxu0
    %v102 = vpop.f32.mrf.mxu0
    %103 = vdwg.mxu0
    %v104 = vld [vmem:[%s2] sm:$0x1]
    %v105 = vunpack.c.l.bf16 %v104
    %v106 = vlaneseq
    %v107 = vshrl.u32 %v106, 7
    %v108 = vsub.s32 0, %v107
    %v109 = vrot.slane %v105, %v108
    %vm110 = vcmp.ge.f32.partialorder %v99, %v109
    %v111 = vsel %vm110, 1.0, -1.0
    %v112 = vpack.c.bf16 %v111, %v111
    %113 = vst [vmem:[#allocation7] sm:$0xf] %v112
    // Predicated region
    $region22: #{tpu_custom_call.1} parent=1 // pred_check
      _
    $region23: #{tpu_custom_call.1} parent=1 // pred_check_branch
      %115 = sbr.rel (0) target = $region25
    $region24: #{tpu_custom_call.1} parent=1 // pred_region
      %s117 = ssub.s32 64, 64
      %118 = vsyncadd [#allocation4], %s117
      %s120 = sshll.u32 [#allocation7], 4
      %s121 = int_to_ptr.vmem [resolvable:$true] %s120
      %123 = dma.vmem_to_hbm [thread:$0]  %s121, 64, %s3, [#allocation4]
    $region25: #{tpu_custom_call.1} parent=1 // pred_fallthru
      _
    // Predicated region
    $region26: #{tpu_custom_call.1} parent=1 // pred_check
      _
    $region27: #{tpu_custom_call.1} parent=1 // pred_check_branch
      %125 = sbr.rel (0) target = $region29
    $region28: #{tpu_custom_call.1} parent=1 // pred_region
      %126 = dma.done [#allocation4], 64
    $region29: #{tpu_custom_call.1} parent=1 // pred_fallthru
      _
    %127 = vsyncpa [#allocation3], 1
    %128 = vsyncpa [#allocation6], 1
    %129 = vsyncpa [#allocation4], 1

</llo_original>
